<compile_context>
chip_gen: v7x
topology: tpu7x:2x2x1
jax: 0.10.0
libtpu: 0.0.40
codegen_flags: <defaults>
</compile_context>

<pallas_src>
import jax
import jax.numpy as jnp
from jax.experimental import pallas as pl
from jax.experimental.pallas import tpu as pltpu


LANE = 512  # lane-dense last dim (multiple of 128)


def _round_up(v, m):
    return ((v + m - 1) // m) * m


def _sublane(itemsize):
    # native sublane granularity per dtype width: f32 -> 8, bf16 -> 16, int8/fp8 -> 32
    return max(8, 32 // max(int(itemsize), 1))


def _chip_config():
    """Per-chip tuning: (target_bytes_per_buffer, vmem_limit_bytes, min_grid_steps)."""
    try:
        vmem = getattr(pltpu.get_tpu_info(), "vmem_capacity_bytes", None)
    except Exception:
        vmem = None
    if vmem is None:
        # Unknown chip: conservative but safe everywhere.
        return 4 << 20, 48 << 20, 4
    if vmem <= (64 << 20):
        # v7x-like: 64 MiB VMEM/TC, ~3.2 TB/s HBM -> bigger tiles to amortize
        # the ~0.35 us per-grid-step overhead.
        return 6 << 20, 48 << 20, 4
    # v5e / v6e: 128 MiB physical VMEM, single TensorCore.
    return 4 << 20, 64 << 20, 4


def _make_lambda_kernel(lambd):
    """Build a Pallas kernel body that applies `lambd` to one VMEM tile."""
    def kernel(x_ref, o_ref):
        o_ref[...] = lambd(x_ref[...]).astype(o_ref.dtype)
    return kernel


def _tilewise_safe(lambd, dtype, lane):
    """True iff the lambda preserves the shape of a representative tile."""
    try:
        probe = jax.eval_shape(lambd, jax.ShapeDtypeStruct((8, lane), dtype))
        return probe.shape == (8, lane)
    except Exception:
        return False


def lambda_layer_pallas(x, lambd, *, lane=LANE):
    """Apply `lambd` to x (any shape) via a Pallas TPU kernel when profitable."""
    orig_shape = x.shape
    n = int(x.size)

    target_block_bytes, vmem_limit, min_grid_steps = _chip_config()

    # Non-tile-safe lambdas (reductions/reshapes/mixing) -> plain XLA,
    # preserving LambdaLayer.forward semantics exactly.
    if n == 0 or not _tilewise_safe(lambd, x.dtype, lane):
        return lambd(x)

    # Tiny inputs: XLA's fused elementwise op beats pallas_call fixed cost.
    if n < min_grid_steps * 8 * lane:
        return lambd(x)

    # Output dtype follows the lambda's promotion rules (PyTorch-like).
    out_dtype = jax.eval_shape(
        lambd, jax.ShapeDtypeStruct(orig_shape, x.dtype)).dtype

    in_isz = jnp.dtype(x.dtype).itemsize
    out_isz = jnp.dtype(out_dtype).itemsize
    sub = _sublane(min(in_isz, out_isz))          # narrowest dtype sets packing

    # --- lane-dense flatten (pad only the < lane-element remainder) --------
    flat = x.reshape(-1)
    rem = n % lane
    if rem:
        flat = jnp.concatenate(
            [flat, jnp.zeros((lane - rem,), dtype=flat.dtype)])
    x2d = flat.reshape(-1, lane)
    rows = x2d.shape[0]

    # --- tile-size selection ------------------------------------------------
    # Budget in+out together against 2 * target_block_bytes; round to the
    # native sublane tile.  Shrink only to guarantee >= min_grid_steps blocks
    # (ragged last block is allowed, so no padding of rows is needed).
    bytes_per_row = lane * (in_isz + out_isz)
    max_rows_by_bytes = max(
        sub, ((2 * target_block_bytes) // bytes_per_row) // sub * sub)
    rows_for_grid = max(sub, _round_up(pl.cdiv(rows, min_grid_steps), sub))
    row_tile = max(sub, min(max_rows_by_bytes, rows_for_grid))

    grid = pl.cdiv(rows, row_tile)
    kernel = _make_lambda_kernel(lambd)

    out2d = pl.pallas_call(
        kernel,
        out_shape=jax.ShapeDtypeStruct((rows, lane), out_dtype),
        grid=(grid,),
        in_specs=[pl.BlockSpec((row_tile, lane), lambda i: (i, 0))],
        out_specs=pl.BlockSpec((row_tile, lane), lambda i: (i, 0)),
        compiler_params=pltpu.CompilerParams(
            dimension_semantics=("parallel",),
            vmem_limit_bytes=vmem_limit,
        ),
    )(x2d)

    out_flat = out2d.reshape(-1)
    if rem:
        out_flat = out_flat[:n]
    return out_flat.reshape(orig_shape)


class LambdaLayer:
    """JAX/Pallas equivalent of the PyTorch LambdaLayer module."""

    def __init__(self, lambd):
        self.lambd = lambd

    def __call__(self, x):
        return lambda_layer_pallas(x, self.lambd)


if __name__ == "__main__":
    key = jax.random.PRNGKey(0)

    lambd = lambda t: t * 2.0 + 1.0
    layer = LambdaLayer(lambd)

    # 1) Small NCHW feature map (tiny-input XLA fallback path).
    x = jax.random.normal(key, (2, 4, 16, 16), dtype=jnp.float32)
    out = jax.block_until_ready(layer(x))
    ref = lambd(x)
    assert out.shape == x.shape and out.dtype == ref.dtype
    assert jnp.allclose(out, ref, atol=1e-6, rtol=1e-6)

    # 2) Larger map: exercises the Pallas kernel, zero-copy (lane-multiple) path.
    k1 = jax.random.PRNGKey(1)
    x_big = jax.random.normal(k1, (4, 8, 32, 32), dtype=jnp.float32)
    out_big = jax.block_until_ready(layer(x_big))
    ref_big = lambd(x_big)
    assert out_big.shape == x_big.shape and out_big.dtype == ref_big.dtype
    assert jnp.allclose(out_big, ref_big, atol=1e-6, rtol=1e-6)

    # 3) Non-lane-multiple length: exercises the remainder pad + ragged last block.
    k2 = jax.random.PRNGKey(2)
    x_rag = jax.random.normal(k2, (3, 7, 41, 29), dtype=jnp.float32)
    out_rag = jax.block_until_ready(layer(x_rag))
    ref_rag = lambd(x_rag)
    assert out_rag.shape == x_rag.shape and out_rag.dtype == ref_rag.dtype
    assert jnp.allclose(out_rag, ref_rag, atol=1e-6, rtol=1e-6)

    # 4) bf16 input: exercises dtype-aware (sublane=16) tile rounding.
    k3 = jax.random.PRNGKey(3)
    x_bf = jax.random.normal(k3, (4, 8, 32, 32), dtype=jnp.bfloat16)
    out_bf = jax.block_until_ready(layer(x_bf))
    ref_bf = lambd(x_bf)
    assert out_bf.shape == x_bf.shape and out_bf.dtype == ref_bf.dtype
    assert jnp.allclose(out_bf.astype(jnp.float32), ref_bf.astype(jnp.float32),
                        atol=1e-2, rtol=1e-2)

    print("KERNEL_OK")
</pallas_src>

<mosaic_0001>
module attributes {stable_mosaic.version = 11 : i64} {
  func.func @kernel(%arg0: i32, %arg1: memref<16x512xf32, #tpu.memory_space<vmem>>, %arg2: memref<16x512xf32, #tpu.memory_space<vmem>>) attributes {dimension_semantics = [#tpu.dimension_semantics<parallel>], iteration_bounds = array<i64: 4>, scalar_prefetch = 0 : i64, scratch_operands = 0 : i64, tpu.core_type = #tpu.core_type<tc>, window_params = [{transform_indices = @transform_0, window_bounds = array<i64: 16, 512>}, {transform_indices = @transform_1, window_bounds = array<i64: 16, 512>}]} {
    %c0 = arith.constant 0 : index
    %c0_0 = arith.constant 0 : index
    %0 = vector.load %arg1[%c0, %c0_0] : memref<16x512xf32, #tpu.memory_space<vmem>>, vector<16x512xf32>
    %cst = arith.constant 2.000000e+00 : f32
    %1 = vector.broadcast %cst : f32 to vector<16x512xf32>
    %2 = arith.mulf %0, %1 : vector<16x512xf32>
    %cst_1 = arith.constant 1.000000e+00 : f32
    %3 = vector.broadcast %cst_1 : f32 to vector<16x512xf32>
    %4 = arith.addf %2, %3 : vector<16x512xf32>
    %c0_2 = arith.constant 0 : index
    %c0_3 = arith.constant 0 : index
    %5 = vector.load %arg2[%c0_2, %c0_3] : memref<16x512xf32, #tpu.memory_space<vmem>>, vector<16x512xf32>
    tpu.vector_store %arg2[%c0_2, %c0_3], %4 {strides = array<i32>} : memref<16x512xf32, #tpu.memory_space<vmem>>, vector<16x512xf32>,
    return
  }
  func.func @transform_0(%arg0: i32) -> (i32, i32) {
    %c0_i32 = arith.constant 0 : i32
    %c0_i32_0 = arith.constant 0 : i32
    return %arg0, %c0_i32 : i32, i32
  }
  func.func @transform_1(%arg0: i32) -> (i32, i32) {
    %c0_i32 = arith.constant 0 : i32
    %c0_i32_0 = arith.constant 0 : i32
    return %arg0, %c0_i32 : i32, i32
  }
}

</mosaic_0001>

<llo_original>
// kernel: tpu_custom_call.1
$region0: #{tpu_custom_call.1}
  #allocation0 [shape = 'u32[]', space=smem, size = 0x4, offset = 0x4, fixed_abs, tag = 'smem constant byte address 0x4 - core index']
  #allocation1 [shape = 'u32[144,128]{1,0:T(1,128)}', space=vmem, size = 0x12000, scoped, tag = 'internal scratch']
  %s0 = inlined_call_operand.hbm [shape: f32[64,512], index: 0, kind: input, shape index: {}]
  %s1 = inlined_call_operand.hbm [shape: f32[64,512], index: 1, kind: output, shape index: {}]
  %s2 = sld [smem:[#allocation0]]
  $region41: #{tpu_custom_call.1} parent=0
    _
  %s4 = ssub.s32 1, %s2
  %s5 = scalar_select 0, %s4, %s2
  $region1: #{tpu_custom_call.1} parent=0
    #allocation2 [shape = 'u8[65536]{0}', space=vmem, size = 0x10000, scoped, tag = 'input window, operand 0']
    #allocation3 [shape = 's32[2]{0}', space=sflag, size = 0x8, scoped, tag = 'scoped memory for tpu_custom_call.1']
    #allocation4 [shape = 's32[2]{0}', space=sflag, size = 0x8, scoped, tag = 'scoped memory for tpu_custom_call.1']
    #allocation5 [shape = 'u8[65536]{0}', space=vmem, size = 0x10000, scoped, tag = 'output window, operand 0']
    %6 = vsyncpa [#allocation3], 0
    %s7 = scalar_lea.sflag [#allocation3], 1
    %8 = vsyncpa %s7, 0
    %9 = vsyncpa [#allocation4], 0
    %s10 = scalar_lea.sflag [#allocation4], 1
    %11 = vsyncpa %s10, 0
    loop: start=0, step=1, limit=6
    $region2: #{tpu_custom_call.1} parent=1 // loop_pre_header
      _
    $region3: #{tpu_custom_call.1} parent=1 // loop_header
      %s13 = sphi 0, %s17
      %p14 = scmp.ge.s32.totalorder %s13, 6
      %s23 = sphi 0, %s25
      %s26 = sphi 0, %s23
      %s27 = sphi 0, %s26
      %s43 = sphi 0, %s27
      %s49 = sphi 0, %s51
      %s52 = sphi 0, %s49
      %s53 = sphi 0, %s52
      %s69 = sphi 0, %s53
    $region4: #{tpu_custom_call.1} parent=1 // loop_header_branch
      %16 = sbr.rel (%p14) target = $region8
    $region5: #{tpu_custom_call.1} parent=1 // loop_body
      %s18 = ssub.s32 %s13, 1
      %s19 = ssub.s32 %s13, 2
      %s20 = sadd.s32 %s13, 1
      %s21 = ssub.s32 %s13, %s20
      %p22 = scmp.eq.s32.totalorder %s21, 0
      %s24 = sadd.s32 %s23, 1
      %s25 = scalar_select %p22, %s23, %s24
      %p28 = pneg %p22
      %p29 = scmp.eq.s32.totalorder %s13, 3
      %p30 = por %p28, %p29
      %p31 = scmp.ne.s32.totalorder %s23, %s26
      %p32 = scmp.eq.s32.totalorder %s13, 0
      %p33 = por %p31, %p32
      %p34 = scmp.ne.s32.totalorder %s23, %s26
      %p35 = scmp.eq.s32.totalorder %s18, 3
      %p36 = por %p34, %p35
      %p37 = scmp.ne.s32.totalorder %s26, %s27
      %p38 = scmp.eq.s32.totalorder %s18, 0
      %p39 = por %p37, %p38
      %p40 = scmp.ne.s32.totalorder %s26, %s27
      %p41 = scmp.eq.s32.totalorder %s19, 3
      %p42 = por %p40, %p41
      %p44 = scmp.ne.s32.totalorder %s27, %s43
      %p45 = scmp.eq.s32.totalorder %s19, 0
      %p46 = por %p44, %p45
      %s47 = ssub.s32 %s13, %s20
      %p48 = scmp.eq.s32.totalorder %s47, 0
      %s50 = sadd.s32 %s49, 1
      %s51 = scalar_select %p48, %s49, %s50
      %p54 = pneg %p48
      %p55 = scmp.eq.s32.totalorder %s13, 3
      %p56 = por %p54, %p55
      %p57 = scmp.ne.s32.totalorder %s49, %s52
      %p58 = scmp.eq.s32.totalorder %s13, 0
      %p59 = por %p57, %p58
      %p60 = scmp.ne.s32.totalorder %s49, %s52
      %p61 = scmp.eq.s32.totalorder %s18, 3
      %p62 = por %p60, %p61
      %p63 = scmp.ne.s32.totalorder %s52, %s53
      %p64 = scmp.eq.s32.totalorder %s18, 0
      %p65 = por %p63, %p64
      %p66 = scmp.ne.s32.totalorder %s52, %s53
      %p67 = scmp.eq.s32.totalorder %s19, 3
      %p68 = por %p66, %p67
      %p70 = scmp.ne.s32.totalorder %s53, %s69
      %p71 = scmp.eq.s32.totalorder %s19, 0
      %p72 = por %p70, %p71
      %p73 = scmp.le.s32.totalorder 1, %s13
      %p74 = scmp.lt.s32.totalorder %s13, 5
      %p75 = pnand %p73, %p74
      %p76 = pneg %p75
      // Predicated region
      $region9: #{tpu_custom_call.1} parent=5 // pred_check
        _
      $region10: #{tpu_custom_call.1} parent=5 // pred_check_branch
        %78 = sbr.rel (%p75) target = $region12
      $region11: #{tpu_custom_call.1} parent=5 // pred_region
        %s79 = ssub.s32 %s13, 1
      $region12: #{tpu_custom_call.1} parent=5 // pred_fallthru
        _
      %p80 = scmp.lt.s32.totalorder %s13, 4
      // Predicated region
      $region13: #{tpu_custom_call.1} parent=5 // pred_check
        %p81 = pneg %p80
      $region14: #{tpu_custom_call.1} parent=5 // pred_check_branch
        %83 = sbr.rel (%p81) target = $region16
      $region15: #{tpu_custom_call.1} parent=5 // pred_region
        // Predicated region
        $region17: #{tpu_custom_call.1} parent=15 // pred_check
          %p84 = pneg %p33
        $region18: #{tpu_custom_call.1} parent=15 // pred_check_branch
          %86 = sbr.rel (%p84) target = $region20
        $region19: #{tpu_custom_call.1} parent=15 // pred_region
          %s87 = sand.u32 %s23, 1
          %s88 = scalar_lea.sflag [#allocation3], %s87
          %s89 = sand.u32 %s23, 1
          %s90 = smul.addr %s89, 64
          %s91 = scalar_lea.vmem [#allocation2], %s90
          %s92 = smul.u32 2, %s13
          %s94 = ssub.s32 1024, 1024
          %95 = vsyncadd %s88, %s94
          %s96 = smul.addr %s92, 4
          %s97 = smul.addr %s96, 128
          %s98 = scalar_lea.hbm %s0, %s97
          %s99 = sshll.u32 %s91, 4
          %s100 = int_to_ptr.vmem [resolvable:$true] %s99
          %105 = dma.hbm_to_vmem [thread:$0]  %s98, 1024, %s100, %s88, 512, 512, 32
        $region20: #{tpu_custom_call.1} parent=15 // pred_fallthru
          _
      $region16: #{tpu_custom_call.1} parent=5 // pred_fallthru
        _
      %p106 = scmp.le.s32.totalorder 1, %s13
      %p107 = scmp.lt.s32.totalorder %s13, 5
      %p108 = pnand %p106, %p107
      %p109 = pneg %p108
      // Predicated region
      $region21: #{tpu_custom_call.1} parent=5 // pred_check
        _
      $region22: #{tpu_custom_call.1} parent=5 // pred_check_branch
        %111 = sbr.rel (%p108) target = $region24
      $region23: #{tpu_custom_call.1} parent=5 // pred_region
        %s112 = ssub.s32 %s13, 1
        %s113 = sand.u32 %s26, 1
        %s114 = scalar_lea.sflag [#allocation3], %s113
        %s115 = sand.u32 %s26, 1
        %s116 = smul.addr %s115, 64
        %s117 = scalar_lea.vmem [#allocation2], %s116
        // Predicated region
        $region25: #{tpu_custom_call.1} parent=23 // pred_check
          %p118 = pneg %p39
        $region26: #{tpu_custom_call.1} parent=23 // pred_check_branch
          %120 = sbr.rel (%p118) target = $region28
        $region27: #{tpu_custom_call.1} parent=23 // pred_region
          %121 = dma.done %s114, 1024
        $region28: #{tpu_custom_call.1} parent=23 // pred_fallthru
          _
        %s122 = sand.u32 %s26, 1
        %s123 = scalar_lea.sflag [#allocation3], %s122
        %s124 = sand.u32 %s26, 1
        %s125 = smul.addr %s124, 64
        %s126 = scalar_lea.vmem [#allocation2], %s125
        %p127 = pneg %p39
        %p128 = pneg %p36
        %p129 = pneg %p65
        %p130 = pneg %p62
        %s131 = sand.u32 %s52, 1
        %s132 = scalar_lea.sflag [#allocation4], %s131
        %s133 = sand.u32 %s52, 1
        %s134 = smul.addr %s133, 64
        %s135 = scalar_lea.vmem [#allocation5], %s134
        %s136 = smul.u32 2, %s18
        %s137 = smul.u32 2, %s18
        %v138 = vld [vmem:[%s117] sm:$0xff]
        %v139 = vld [vmem:[%s117 + $0x8] sm:$0xff]
        %v140 = vld [vmem:[%s117 + $0x10] sm:$0xff]
        %v141 = vld [vmem:[%s117 + $0x18] sm:$0xff]
        %v142 = vld [vmem:[%s117 + $0x20] sm:$0xff]
        %v143 = vld [vmem:[%s117 + $0x28] sm:$0xff]
        %v144 = vld [vmem:[%s117 + $0x30] sm:$0xff]
        %v145 = vld [vmem:[%s117 + $0x38] sm:$0xff]
        %v146 = vmul.f32 %v138, 2.0
        %v147 = vmul.f32 %v139, 2.0
        %v148 = vmul.f32 %v140, 2.0
        %v149 = vmul.f32 %v141, 2.0
        %v150 = vmul.f32 %v142, 2.0
        %v151 = vmul.f32 %v143, 2.0
        %v152 = vmul.f32 %v144, 2.0
        %v153 = vmul.f32 %v145, 2.0
        %v154 = vadd.f32 %v146, 1.0
        %v155 = vadd.f32 %v147, 1.0
        %v156 = vadd.f32 %v148, 1.0
        %v157 = vadd.f32 %v149, 1.0
        %v158 = vadd.f32 %v150, 1.0
        %v159 = vadd.f32 %v151, 1.0
        %v160 = vadd.f32 %v152, 1.0
        %v161 = vadd.f32 %v153, 1.0
        %162 = vst [vmem:[%s135] sm:$0xff] %v154
        %163 = vst [vmem:[%s135 + $0x8] sm:$0xff] %v155
        %164 = vst [vmem:[%s135 + $0x10] sm:$0xff] %v156
        %165 = vst [vmem:[%s135 + $0x18] sm:$0xff] %v157
        %166 = vst [vmem:[%s135 + $0x20] sm:$0xff] %v158
        %167 = vst [vmem:[%s135 + $0x28] sm:$0xff] %v159
        %168 = vst [vmem:[%s135 + $0x30] sm:$0xff] %v160
        %169 = vst [vmem:[%s135 + $0x38] sm:$0xff] %v161
        %s170 = sand.u32 %s52, 1
        %s171 = scalar_lea.sflag [#allocation4], %s170
        %s172 = sand.u32 %s52, 1
        %s173 = smul.addr %s172, 64
        %s174 = scalar_lea.vmem [#allocation5], %s173
        // Predicated region
        $region29: #{tpu_custom_call.1} parent=23 // pred_check
          %p175 = pneg %p62
        $region30: #{tpu_custom_call.1} parent=23 // pred_check_branch
          %177 = sbr.rel (%p175) target = $region32
        $region31: #{tpu_custom_call.1} parent=23 // pred_region
          %s178 = smul.u32 2, %s18
          %s180 = ssub.s32 1024, 1024
          %181 = vsyncadd %s171, %s180
          %s182 = smul.addr %s178, 4
          %s183 = smul.addr %s182, 128
          %s184 = scalar_lea.hbm %s1, %s183
          %s185 = sshll.u32 %s174, 4
          %s186 = int_to_ptr.vmem [resolvable:$true] %s185
          %191 = dma.vmem_to_hbm [thread:$0]  %s186, 1024, %s184, %s171, 512, 512, 32
        $region32: #{tpu_custom_call.1} parent=23 // pred_fallthru
          _
      $region24: #{tpu_custom_call.1} parent=5 // pred_fallthru
        _
      %p192 = scmp.le.s32.totalorder 2, %s13
      // Predicated region
      $region33: #{tpu_custom_call.1} parent=5 // pred_check
        %p193 = pneg %p192
      $region34: #{tpu_custom_call.1} parent=5 // pred_check_branch
        %195 = sbr.rel (%p193) target = $region36
      $region35: #{tpu_custom_call.1} parent=5 // pred_region
        %s196 = ssub.s32 %s13, 2
        // Predicated region
        $region37: #{tpu_custom_call.1} parent=35 // pred_check
          %p197 = pneg %p68
        $region38: #{tpu_custom_call.1} parent=35 // pred_check_branch
          %199 = sbr.rel (%p197) target = $region40
        $region39: #{tpu_custom_call.1} parent=35 // pred_region
          %s200 = sand.u32 %s53, 1
          %s201 = scalar_lea.sflag [#allocation4], %s200
          %s202 = sand.u32 %s53, 1
          %s203 = smul.addr %s202, 64
          %s204 = scalar_lea.vmem [#allocation5], %s203
          %205 = dma.done %s201, 1024
        $region40: #{tpu_custom_call.1} parent=35 // pred_fallthru
          _
      $region36: #{tpu_custom_call.1} parent=5 // pred_fallthru
        _
    $region6: #{tpu_custom_call.1} parent=1 // loop_footer
      %s17 = sadd.s32 1, %s13
    $region7: #{tpu_custom_call.1} parent=1 // loop_footer_branch
      %12 = sbr.rel target = $region3
    $region8: #{tpu_custom_call.1} parent=1 // loop_exit
      _
    %206 = vsyncpa [#allocation3], 1
    %s207 = scalar_lea.sflag [#allocation3], 1
    %208 = vsyncpa %s207, 1
    %209 = vsyncpa [#allocation4], 1
    %s210 = scalar_lea.sflag [#allocation4], 1
    %211 = vsyncpa %s210, 1

</llo_original>
